<compile_context>
chip_gen: v7x
topology: tpu7x:2x2x1
jax: 0.10.0
libtpu: 0.0.40
codegen_flags: <defaults>
</compile_context>

<pallas_src>
import math

import jax
import jax.numpy as jnp
from jax.experimental import pallas as pl
from jax.experimental.pallas import tpu as pltpu

N_OBS = 8                       # utils.flatdim(env.observation_space) -> synthetic value
IN_DIM = N_OBS + 1              # layer1 input  (9)
HID = 32
OUT_DIM = N_OBS + 2             # layer3 output (10)
PARAM_COLS = max(HID, OUT_DIM)  # 32

# Row offsets inside the packed parameter slab (rows, PARAM_COLS).
R_W1 = 0
R_B1 = R_W1 + IN_DIM
R_W2 = R_B1 + 1
R_B2 = R_W2 + HID
R_W3 = R_B2 + 1
R_B3 = R_W3 + HID
PARAM_ROWS = R_B3 + 1           # 76


def _leaky_relu(x, slope=0.01):
    # mul + max (cheaper than cmp + select); valid for slope < 1.
    return jnp.maximum(x, slope * x)


def dqn_mlp_kernel(x_ref, p_ref, out_ref):
    """x_ref: (TB, IN_DIM), p_ref: (PARAM_ROWS, PARAM_COLS), out_ref: (TB, OUT_DIM)."""
    x = x_ref[...]
    P = p_ref[...]

    w1 = P[R_W1:R_W1 + IN_DIM, :HID]
    b1 = P[R_B1:R_B1 + 1, :HID]
    w2 = P[R_W2:R_W2 + HID, :HID]
    b2 = P[R_B2:R_B2 + 1, :HID]
    w3 = P[R_W3:R_W3 + HID, :OUT_DIM]
    b3 = P[R_B3:R_B3 + 1, :OUT_DIM]

    h = _leaky_relu(jnp.dot(x, w1, preferred_element_type=jnp.float32) + b1)
    h = _leaky_relu(jnp.dot(h, w2, preferred_element_type=jnp.float32) + b2)
    h = jnp.dot(h, w3, preferred_element_type=jnp.float32) + b3        # (TB, OUT_DIM)

    # sigmoid only on the last ("terminal") column; keep everything else raw.
    col = jax.lax.broadcasted_iota(jnp.int32, h.shape, 1)
    out_ref[...] = jnp.where(col == OUT_DIM - 1, jax.nn.sigmoid(h), h)


def dqn_forward(x, packed_params, *, block_b=128):
    """x: (B, IN_DIM) f32, packed_params: (PARAM_ROWS, PARAM_COLS) f32."""
    B = x.shape[0]
    TB = min(block_b, B)                      # batch tile (== B for tiny batches)
    b_pad = ((B + TB - 1) // TB) * TB         # pad batch to a multiple of TB
    if b_pad != B:
        x = jnp.pad(x, ((0, b_pad - B), (0, 0)))

    y = pl.pallas_call(
        dqn_mlp_kernel,
        out_shape=jax.ShapeDtypeStruct((b_pad, OUT_DIM), jnp.float32),
        grid=(b_pad // TB,),
        in_specs=[
            pl.BlockSpec((TB, IN_DIM), lambda i: (i, 0)),              # batch-tiled x
            pl.BlockSpec((PARAM_ROWS, PARAM_COLS), lambda i: (0, 0)),  # VMEM-resident params
        ],
        out_specs=pl.BlockSpec((TB, OUT_DIM), lambda i: (i, 0)),
        compiler_params=pltpu.CompilerParams(
            dimension_semantics=("parallel",)),   # shards batch tiles across TCs on v7x
    )(x, packed_params)

    y = y[:B]
    obs = y[:, :N_OBS]
    reward = y[:, N_OBS:N_OBS + 1]
    terminal = y[:, N_OBS + 1:N_OBS + 2]
    return obs, reward, terminal


# ---------------------- parameter construction / packing ----------------------

def xavier_uniform(key, fan_in, fan_out):
    # torch.nn.init.xavier_uniform_ on weight (fan_out, fan_in); we store the
    # transpose (fan_in, fan_out) so the kernel computes x @ W.
    bound = math.sqrt(6.0 / (fan_in + fan_out))
    return jax.random.uniform(key, (fan_in, fan_out), jnp.float32, -bound, bound)


def linear_bias(key, fan_in, fan_out):
    # PyTorch Linear default bias init: U(-1/sqrt(fan_in), 1/sqrt(fan_in)).
    bound = 1.0 / math.sqrt(fan_in)
    return jax.random.uniform(key, (1, fan_out), jnp.float32, -bound, bound)


def make_params(key):
    ks = jax.random.split(key, 6)
    w1 = xavier_uniform(ks[0], IN_DIM, HID)
    b1 = linear_bias(ks[1], IN_DIM, HID)
    w2 = xavier_uniform(ks[2], HID, HID)
    b2 = linear_bias(ks[3], HID, HID)
    w3 = xavier_uniform(ks[4], HID, OUT_DIM)
    b3 = linear_bias(ks[5], HID, OUT_DIM)
    return (w1, b1, w2, b2, w3, b3)


def pack_params(params):
    """Concatenate all weights/biases into one (PARAM_ROWS, PARAM_COLS) slab."""
    w1, b1, w2, b2, w3, b3 = params

    def pad_cols(a):
        return jnp.pad(a, ((0, 0), (0, PARAM_COLS - a.shape[1])))

    slab = jnp.concatenate(
        [pad_cols(w1), pad_cols(b1),
         pad_cols(w2), pad_cols(b2),
         pad_cols(w3), pad_cols(b3)], axis=0).astype(jnp.float32)
    assert slab.shape == (PARAM_ROWS, PARAM_COLS)
    return slab


def reference_forward(x, params):
    w1, b1, w2, b2, w3, b3 = params
    h = _leaky_relu(x @ w1 + b1)
    h = _leaky_relu(h @ w2 + b2)
    h = h @ w3 + b3
    return (h[:, :N_OBS], h[:, N_OBS:N_OBS + 1],
            jax.nn.sigmoid(h[:, N_OBS + 1:N_OBS + 2]))


if __name__ == "__main__":
    key = jax.random.PRNGKey(0)
    k_x, k_p, k_x2 = jax.random.split(key, 3)

    params = make_params(k_p)
    packed = pack_params(params)

    # Small batch (single grid step, TB == B).
    batch = 4
    x = jax.random.normal(k_x, (batch, IN_DIM), jnp.float32)
    obs, reward, terminal = jax.block_until_ready(dqn_forward(x, packed))
    r_obs, r_rew, r_term = reference_forward(x, params)
    assert obs.shape == (batch, N_OBS)
    assert reward.shape == (batch, 1)
    assert terminal.shape == (batch, 1)
    assert jnp.allclose(obs, r_obs, atol=1e-5)
    assert jnp.allclose(reward, r_rew, atol=1e-5)
    assert jnp.allclose(terminal, r_term, atol=1e-5)

    # Larger batch exercising the batch grid + padding path (TB=128, grid=3).
    batch2 = 300
    x2 = jax.random.normal(k_x2, (batch2, IN_DIM), jnp.float32)
    obs2, rew2, term2 = jax.block_until_ready(dqn_forward(x2, packed))
    r_obs2, r_rew2, r_term2 = reference_forward(x2, params)
    assert obs2.shape == (batch2, N_OBS)
    assert rew2.shape == (batch2, 1)
    assert term2.shape == (batch2, 1)
    assert jnp.allclose(obs2, r_obs2, atol=1e-5)
    assert jnp.allclose(rew2, r_rew2, atol=1e-5)
    assert jnp.allclose(term2, r_term2, atol=1e-5)

    print("KERNEL_OK")
</pallas_src>

<mosaic_0001>
module attributes {stable_mosaic.version = 11 : i64} {
  func.func @dqn_mlp_kernel(%arg0: i32, %arg1: memref<4x9xf32, #tpu.memory_space<vmem>>, %arg2: memref<76x32xf32, #tpu.memory_space<vmem>>, %arg3: memref<4x10xf32, #tpu.memory_space<vmem>>) attributes {dimension_semantics = [#tpu.dimension_semantics<parallel>], iteration_bounds = array<i64: 1>, scalar_prefetch = 0 : i64, scratch_operands = 0 : i64, tpu.core_type = #tpu.core_type<tc>, window_params = [{transform_indices = @transform_0, window_bounds = array<i64: 4, 9>}, {pipeline_mode = #tpu.pipeline_mode<synchronous>, transform_indices = @transform_1, window_bounds = array<i64: 76, 32>}, {transform_indices = @transform_2, window_bounds = array<i64: 4, 10>}]} {
    %c0 = arith.constant 0 : index
    %c0_0 = arith.constant 0 : index
    %0 = vector.load %arg1[%c0, %c0_0] : memref<4x9xf32, #tpu.memory_space<vmem>>, vector<4x9xf32>
    %c0_1 = arith.constant 0 : index
    %c0_2 = arith.constant 0 : index
    %1 = vector.load %arg2[%c0_1, %c0_2] : memref<76x32xf32, #tpu.memory_space<vmem>>, vector<76x32xf32>
    %2 = vector.extract_strided_slice %1 {offsets = [0, 0], sizes = [9, 32], strides = [1, 1]} : vector<76x32xf32> to vector<9x32xf32>
    %3 = vector.extract_strided_slice %1 {offsets = [9, 0], sizes = [1, 32], strides = [1, 1]} : vector<76x32xf32> to vector<1x32xf32>
    %4 = vector.extract_strided_slice %1 {offsets = [10, 0], sizes = [32, 32], strides = [1, 1]} : vector<76x32xf32> to vector<32x32xf32>
    %5 = vector.extract_strided_slice %1 {offsets = [42, 0], sizes = [1, 32], strides = [1, 1]} : vector<76x32xf32> to vector<1x32xf32>
    %6 = vector.extract_strided_slice %1 {offsets = [43, 0], sizes = [32, 10], strides = [1, 1]} : vector<76x32xf32> to vector<32x10xf32>
    %7 = vector.extract_strided_slice %1 {offsets = [75, 0], sizes = [1, 10], strides = [1, 1]} : vector<76x32xf32> to vector<1x10xf32>
    %cst = arith.constant dense<0.000000e+00> : vector<4x32xf32>
    %8 = tpu.matmul %0, %2, %cst {dimension_numbers = #tpu.dot_dimension_numbers<[1], [0], [0], [1], [0, 0, 1, 1], [], []>} : vector<4x9xf32>, vector<9x32xf32>, vector<4x32xf32> -> vector<4x32xf32>
    %9 = vector.broadcast %3 : vector<1x32xf32> to vector<4x32xf32>
    %10 = arith.addf %8, %9 : vector<4x32xf32>
    %cst_3 = arith.constant 0.00999999977 : f32
    %11 = vector.broadcast %cst_3 : f32 to vector<4x32xf32>
    %12 = arith.mulf %11, %10 : vector<4x32xf32>
    %13 = arith.maximumf %10, %12 : vector<4x32xf32>
    %cst_4 = arith.constant dense<0.000000e+00> : vector<4x32xf32>
    %14 = tpu.matmul %13, %4, %cst_4 {dimension_numbers = #tpu.dot_dimension_numbers<[1], [0], [0], [1], [0, 0, 1, 1], [], []>} : vector<4x32xf32>, vector<32x32xf32>, vector<4x32xf32> -> vector<4x32xf32>
    %15 = vector.broadcast %5 : vector<1x32xf32> to vector<4x32xf32>
    %16 = arith.addf %14, %15 : vector<4x32xf32>
    %cst_5 = arith.constant 0.00999999977 : f32
    %17 = vector.broadcast %cst_5 : f32 to vector<4x32xf32>
    %18 = arith.mulf %17, %16 : vector<4x32xf32>
    %19 = arith.maximumf %16, %18 : vector<4x32xf32>
    %cst_6 = arith.constant dense<0.000000e+00> : vector<4x10xf32>
    %20 = tpu.matmul %19, %6, %cst_6 {dimension_numbers = #tpu.dot_dimension_numbers<[1], [0], [0], [1], [0, 0, 1, 1], [], []>} : vector<4x32xf32>, vector<32x10xf32>, vector<4x10xf32> -> vector<4x10xf32>
    %21 = vector.broadcast %7 : vector<1x10xf32> to vector<4x10xf32>
    %22 = arith.addf %20, %21 : vector<4x10xf32>
    %23 = tpu.iota {dimensions = array<i32: 1>} : vector<4x10xi32>
    %c9_i32 = arith.constant 9 : i32
    %24 = vector.broadcast %c9_i32 : i32 to vector<4x10xi32>
    %25 = arith.cmpi eq, %23, %24 : vector<4x10xi32>
    %26 = arith.negf %22 : vector<4x10xf32>
    %27 = math.exp %26 : vector<4x10xf32>
    %cst_7 = arith.constant 1.000000e+00 : f32
    %28 = vector.broadcast %cst_7 : f32 to vector<4x10xf32>
    %29 = arith.addf %28, %27 : vector<4x10xf32>
    %30 = arith.divf %28, %29 : vector<4x10xf32>
    %31 = arith.select %25, %30, %22 : vector<4x10xi1>, vector<4x10xf32>
    %c0_8 = arith.constant 0 : index
    %c0_9 = arith.constant 0 : index
    %32 = vector.load %arg3[%c0_8, %c0_9] : memref<4x10xf32, #tpu.memory_space<vmem>>, vector<4x10xf32>
    tpu.vector_store %arg3[%c0_8, %c0_9], %31 {strides = array<i32>} : memref<4x10xf32, #tpu.memory_space<vmem>>, vector<4x10xf32>,
    return
  }
  func.func @transform_0(%arg0: i32) -> (i32, i32) {
    %c0_i32 = arith.constant 0 : i32
    %c0_i32_0 = arith.constant 0 : i32
    return %arg0, %c0_i32 : i32, i32
  }
  func.func @transform_1(%arg0: i32) -> (i32, i32) {
    %c0_i32 = arith.constant 0 : i32
    %c0_i32_0 = arith.constant 0 : i32
    %c0_i32_1 = arith.constant 0 : i32
    return %c0_i32, %c0_i32_0 : i32, i32
  }
  func.func @transform_2(%arg0: i32) -> (i32, i32) {
    %c0_i32 = arith.constant 0 : i32
    %c0_i32_0 = arith.constant 0 : i32
    return %arg0, %c0_i32 : i32, i32
  }
}

</mosaic_0001>

<llo_original>
// kernel: tpu_custom_call.1
$region0: #{tpu_custom_call.1}
  #allocation0 [shape = 'u32[]', space=smem, size = 0x4, offset = 0x4, fixed_abs, tag = 'smem constant byte address 0x4 - core index']
  #allocation1 [shape = 'u32[144,128]{1,0:T(1,128)}', space=vmem, size = 0x12000, scoped, tag = 'internal scratch']
  %s0 = inlined_call_operand.vmem [shape: f32[4,9], index: 0, kind: input, shape index: {}]
  %s1 = inlined_call_operand.vmem [shape: f32[76,32], index: 1, kind: input, shape index: {}]
  %s2 = inlined_call_operand.hbm [shape: f32[4,10], index: 2, kind: output, shape index: {}]
  %s3 = sld [smem:[#allocation0]]
  $region18: #{tpu_custom_call.1} parent=0
    _
  %s5 = ssub.s32 1, %s3
  %s6 = scalar_select 0, %s5, %s3
  $region1: #{tpu_custom_call.1} parent=0
    #allocation2 [shape = 'u8[2048]{0}', space=vmem, size = 0x800, scoped, tag = 'output window, operand 0, single buffered']
    #allocation3 [shape = 's32[1]{0}', space=sflag, size = 0x4, scoped, tag = 'scoped memory for tpu_custom_call.1']
    %7 = vsyncpa [#allocation3], 0
    // Predicated region
    $region2: #{tpu_custom_call.1} parent=1 // pred_check
      _
    $region3: #{tpu_custom_call.1} parent=1 // pred_check_branch
      %9 = sbr.rel (0) target = $region5
    $region4: #{tpu_custom_call.1} parent=1 // pred_region
      _
    $region5: #{tpu_custom_call.1} parent=1 // pred_fallthru
      _
    // Predicated region
    $region6: #{tpu_custom_call.1} parent=1 // pred_check
      _
    $region7: #{tpu_custom_call.1} parent=1 // pred_check_branch
      %11 = sbr.rel (0) target = $region9
    $region8: #{tpu_custom_call.1} parent=1 // pred_region
      _
    $region9: #{tpu_custom_call.1} parent=1 // pred_fallthru
      _
    %v12 = vld [vmem:[%s0] sm:$0xf]
    %v13 = vld [vmem:[%s1] sm:$0xff]
    %v14 = vld [vmem:[%s1 + $0x8] sm:$0xff]
    %v15 = vld [vmem:[%s1 + $0x10] sm:$0xff]
    %v16 = vld [vmem:[%s1 + $0x18] sm:$0xff]
    %v17 = vld [vmem:[%s1 + $0x20] sm:$0xff]
    %v18 = vld [vmem:[%s1 + $0x28] sm:$0xff]
    %v19 = vld [vmem:[%s1 + $0x30] sm:$0xff]
    %v20 = vld [vmem:[%s1 + $0x38] sm:$0xff]
    %v21 = vld [vmem:[%s1 + $0x40] sm:$0xff]
    %v22 = vld [vmem:[%s1 + $0x48] sm:$0xf]
    %v23 = vlaneseq
    %v24 = vshrl.u32 %v23, 7
    %v25 = vsub.s32 1, %v24
    %v26 = vrot.slane %v14, %v25
    %vm27 = vcmask 72704
    %v29 = vsel %vm27, %v12, 0
    %vm31 = vcmask 1040384
    %v33 = vsel %vm31, %v14, 0
    %35 = vmatprep.subr.mxu0 0.0
    %36 = vmatpush1.msra.mxu0 %v13
    %37 = vmatprep.subr.mxu0 0.0
    %38 = vmatpush1.msra.mxu0 %v33
    %39 = vmatprep.subr.mxu0 0.0
    %40 = vmatpush1.msra.mxu0 0.0
    %41 = vmatprep.subr.mxu0 0.0
    %42 = vmatpush1.msra.mxu0 0.0
    %43 = vmatprep.subr.mxu0 0.0
    %44 = vmatpush1.msra.mxu0 0.0
    %45 = vmatprep.subr.mxu0 0.0
    %46 = vmatpush1.msra.mxu0 0.0
    %47 = vmatprep.subr.mxu0 0.0
    %48 = vmatpush1.msra.mxu0 0.0
    %49 = vmatprep.subr.mxu0 0.0
    %50 = vmatpush1.msra.mxu0 0.0
    %51 = vmatprep.subr.mxu0 0.0
    %52 = vmatpush1.msra.mxu0 0.0
    %53 = vmatprep.subr.mxu0 0.0
    %54 = vmatpush1.msra.mxu0 0.0
    %55 = vmatprep.subr.mxu0 0.0
    %56 = vmatpush1.msra.mxu0 0.0
    %57 = vmatprep.subr.mxu0 0.0
    %58 = vmatpush1.msra.mxu0 0.0
    %59 = vmatprep.subr.mxu0 0.0
    %60 = vmatpush1.msra.mxu0 0.0
    %61 = vmatprep.subr.mxu0 0.0
    %62 = vmatpush1.msra.mxu0 0.0
    %63 = vmatprep.subr.mxu0 0.0
    %64 = vmatpush1.msra.mxu0 0.0
    %65 = vmatprep.subr.mxu0 0.0
    %66 = vmatpush1.msra.mxu0 0.0
    %67 = vmatprep.subr.mxu0 0.0
    %68 = vmatpush1.msra.mxu0 0.0
    %69 = vmatprep.subr.mxu0 0.0
    %70 = vmatpush1.msra.mxu0 0.0
    %71 = vmatprep.subr.mxu0 0.0
    %72 = vmatpush1.msra.mxu0 0.0
    %73 = vmatprep.subr.mxu0 0.0
    %74 = vmatpush1.msra.mxu0 0.0
    %75 = vmatprep.subr.mxu0 0.0
    %76 = vmatpush1.msra.mxu0 0.0
    %77 = vmatprep.subr.mxu0 0.0
    %78 = vmatpush1.msra.mxu0 0.0
    %79 = vmatprep.subr.mxu0 0.0
    %80 = vmatpush1.msra.mxu0 0.0
    %81 = vmatprep.subr.mxu0 0.0
    %82 = vmatpush1.msra.mxu0 0.0
    %83 = vmatprep.subr.mxu0 0.0
    %84 = vmatpush1.msra.mxu0 0.0
    %85 = vmatprep.subr.mxu0 0.0
    %86 = vmatpush1.msra.mxu0 0.0
    %87 = vmatprep.subr.mxu0 0.0
    %88 = vmatpush1.msra.mxu0 0.0
    %89 = vmatprep.subr.mxu0 0.0
    %90 = vmatpush1.msra.mxu0 0.0
    %91 = vmatprep.subr.mxu0 0.0
    %92 = vmatpush1.msra.mxu0 0.0
    %93 = vmatprep.subr.mxu0 0.0
    %94 = vmatpush1.msra.mxu0 0.0
    %95 = vmatprep.subr.mxu0 0.0
    %96 = vmatpush1.msra.mxu0 0.0
    %97 = vmatprep.subr.mxu0 0.0
    %98 = vmatpush1.msra.mxu0 0.0
    %99 = vmatprep.mubr.f32.mxu0 0.0
    %100 = vmatmul.mubr.f32.gmra.mrb[0].mxu0 %v29
    %v101 = vpop.f32.mrb[0].mxu0
    %v102 = vadd.f32 %v26, %v101
    %v103 = vpop.f32.mrb[0].mxu0
    %104 = vdwg.mxu0
    %v105 = vmul.f32 %v102, 0.01
    %v106 = vmax.f32 %v102, %v105
    %v107 = vlaneseq
    %v108 = vshrl.u32 %v107, 7
    %v109 = vsub.s32 2, %v108
    %v110 = vrot.slane %v18, %v109
    %vm115 = vcmask 1045504
    %v116 = vrot.slane %v14, 2
    %v117 = vrot.slane %v15, 2
    %v118 = vsel %vm115, %v116, %v117
    %v119 = vrot.slane %v16, 2
    %v120 = vsel %vm115, %v117, %v119
    %v121 = vrot.slane %v17, 2
    %v122 = vsel %vm115, %v119, %v121
    %v123 = vrot.slane %v18, 2
    %v124 = vsel %vm115, %v121, %v123
    %vm129 = vcmask 261120
    %v131 = vsel %vm129, %v106, 0
    %133 = vmatprep.subr.mxu0 0.0
    %134 = vmatpush1.msra.mxu0 %v118
    %135 = vmatprep.subr.mxu0 0.0
    %136 = vmatpush1.msra.mxu0 %v120
    %137 = vmatprep.subr.mxu0 0.0
    %138 = vmatpush1.msra.mxu0 %v122
    %139 = vmatprep.subr.mxu0 0.0
    %140 = vmatpush1.msra.mxu0 %v124
    %141 = vmatprep.subr.mxu0 0.0
    %142 = vmatpush1.msra.mxu0 0.0
    %143 = vmatprep.subr.mxu0 0.0
    %144 = vmatpush1.msra.mxu0 0.0
    %145 = vmatprep.subr.mxu0 0.0
    %146 = vmatpush1.msra.mxu0 0.0
    %147 = vmatprep.subr.mxu0 0.0
    %148 = vmatpush1.msra.mxu0 0.0
    %149 = vmatprep.subr.mxu0 0.0
    %150 = vmatpush1.msra.mxu0 0.0
    %151 = vmatprep.subr.mxu0 0.0
    %152 = vmatpush1.msra.mxu0 0.0
    %153 = vmatprep.subr.mxu0 0.0
    %154 = vmatpush1.msra.mxu0 0.0
    %155 = vmatprep.subr.mxu0 0.0
    %156 = vmatpush1.msra.mxu0 0.0
    %157 = vmatprep.subr.mxu0 0.0
    %158 = vmatpush1.msra.mxu0 0.0
    %159 = vmatprep.subr.mxu0 0.0
    %160 = vmatpush1.msra.mxu0 0.0
    %161 = vmatprep.subr.mxu0 0.0
    %162 = vmatpush1.msra.mxu0 0.0
    %163 = vmatprep.subr.mxu0 0.0
    %164 = vmatpush1.msra.mxu0 0.0
    %165 = vmatprep.subr.mxu0 0.0
    %166 = vmatpush1.msra.mxu0 0.0
    %167 = vmatprep.subr.mxu0 0.0
    %168 = vmatpush1.msra.mxu0 0.0
    %169 = vmatprep.subr.mxu0 0.0
    %170 = vmatpush1.msra.mxu0 0.0
    %171 = vmatprep.subr.mxu0 0.0
    %172 = vmatpush1.msra.mxu0 0.0
    %173 = vmatprep.subr.mxu0 0.0
    %174 = vmatpush1.msra.mxu0 0.0
    %175 = vmatprep.subr.mxu0 0.0
    %176 = vmatpush1.msra.mxu0 0.0
    %177 = vmatprep.subr.mxu0 0.0
    %178 = vmatpush1.msra.mxu0 0.0
    %179 = vmatprep.subr.mxu0 0.0
    %180 = vmatpush1.msra.mxu0 0.0
    %181 = vmatprep.subr.mxu0 0.0
    %182 = vmatpush1.msra.mxu0 0.0
    %183 = vmatprep.subr.mxu0 0.0
    %184 = vmatpush1.msra.mxu0 0.0
    %185 = vmatprep.subr.mxu0 0.0
    %186 = vmatpush1.msra.mxu0 0.0
    %187 = vmatprep.subr.mxu0 0.0
    %188 = vmatpush1.msra.mxu0 0.0
    %189 = vmatprep.subr.mxu0 0.0
    %190 = vmatpush1.msra.mxu0 0.0
    %191 = vmatprep.subr.mxu0 0.0
    %192 = vmatpush1.msra.mxu0 0.0
    %193 = vmatprep.subr.mxu0 0.0
    %194 = vmatpush1.msra.mxu0 0.0
    %195 = vmatprep.subr.mxu0 0.0
    %196 = vmatpush1.msra.mxu0 0.0
    %197 = vmatprep.mubr.f32.mxu0 0.0
    %198 = vmatmul.mubr.f32.gmra.mrb[0].mxu0 %v131
    %v199 = vpop.f32.mrb[0].mxu0
    %v200 = vadd.f32 %v110, %v199
    %v201 = vpop.f32.mrb[0].mxu0
    %202 = vdwg.mxu0
    %v203 = vmul.f32 %v200, 0.01
    %v204 = vmax.f32 %v200, %v203
    %v205 = vlaneseq
    %v206 = vshrl.u32 %v205, 7
    %v207 = vsub.s32 3, %v206
    %v208 = vrot.slane %v22, %v207
    %vm213 = vcmask 1044480
    %v214 = vrot.slane %v18, 3
    %v215 = vrot.slane %v19, 3
    %v216 = vsel %vm213, %v214, %v215
    %v217 = vrot.slane %v20, 3
    %v218 = vsel %vm213, %v215, %v217
    %v219 = vrot.slane %v21, 3
    %v220 = vsel %vm213, %v217, %v219
    %v221 = vrot.slane %v22, 3
    %v222 = vsel %vm213, %v219, %v221
    %v228 = vsel %vm129, %v204, 0
    %230 = vmatprep.subr.mxu0 0.0
    %231 = vmatpush1.msra.mxu0 %v216
    %232 = vmatprep.subr.mxu0 0.0
    %233 = vmatpush1.msra.mxu0 %v218
    %234 = vmatprep.subr.mxu0 0.0
    %235 = vmatpush1.msra.mxu0 %v220
    %236 = vmatprep.subr.mxu0 0.0
    %237 = vmatpush1.msra.mxu0 %v222
    %238 = vmatprep.subr.mxu0 0.0
    %239 = vmatpush1.msra.mxu0 0.0
    %240 = vmatprep.subr.mxu0 0.0
    %241 = vmatpush1.msra.mxu0 0.0
    %242 = vmatprep.subr.mxu0 0.0
    %243 = vmatpush1.msra.mxu0 0.0
    %244 = vmatprep.subr.mxu0 0.0
    %245 = vmatpush1.msra.mxu0 0.0
    %246 = vmatprep.subr.mxu0 0.0
    %247 = vmatpush1.msra.mxu0 0.0
    %248 = vmatprep.subr.mxu0 0.0
    %249 = vmatpush1.msra.mxu0 0.0
    %250 = vmatprep.subr.mxu0 0.0
    %251 = vmatpush1.msra.mxu0 0.0
    %252 = vmatprep.subr.mxu0 0.0
    %253 = vmatpush1.msra.mxu0 0.0
    %254 = vmatprep.subr.mxu0 0.0
    %255 = vmatpush1.msra.mxu0 0.0
    %256 = vmatprep.subr.mxu0 0.0
    %257 = vmatpush1.msra.mxu0 0.0
    %258 = vmatprep.subr.mxu0 0.0
    %259 = vmatpush1.msra.mxu0 0.0
    %260 = vmatprep.subr.mxu0 0.0
    %261 = vmatpush1.msra.mxu0 0.0
    %262 = vmatprep.subr.mxu0 0.0
    %263 = vmatpush1.msra.mxu0 0.0
    %264 = vmatprep.subr.mxu0 0.0
    %265 = vmatpush1.msra.mxu0 0.0
    %266 = vmatprep.subr.mxu0 0.0
    %267 = vmatpush1.msra.mxu0 0.0
    %268 = vmatprep.subr.mxu0 0.0
    %269 = vmatpush1.msra.mxu0 0.0
    %270 = vmatprep.subr.mxu0 0.0
    %271 = vmatpush1.msra.mxu0 0.0
    %272 = vmatprep.subr.mxu0 0.0
    %273 = vmatpush1.msra.mxu0 0.0
    %274 = vmatprep.subr.mxu0 0.0
    %275 = vmatpush1.msra.mxu0 0.0
    %276 = vmatprep.subr.mxu0 0.0
    %277 = vmatpush1.msra.mxu0 0.0
    %278 = vmatprep.subr.mxu0 0.0
    %279 = vmatpush1.msra.mxu0 0.0
    %280 = vmatprep.subr.mxu0 0.0
    %281 = vmatpush1.msra.mxu0 0.0
    %282 = vmatprep.subr.mxu0 0.0
    %283 = vmatpush1.msra.mxu0 0.0
    %284 = vmatprep.subr.mxu0 0.0
    %285 = vmatpush1.msra.mxu0 0.0
    %286 = vmatprep.subr.mxu0 0.0
    %287 = vmatpush1.msra.mxu0 0.0
    %288 = vmatprep.subr.mxu0 0.0
    %289 = vmatpush1.msra.mxu0 0.0
    %290 = vmatprep.subr.mxu0 0.0
    %291 = vmatpush1.msra.mxu0 0.0
    %292 = vmatprep.subr.mxu0 0.0
    %293 = vmatpush1.msra.mxu0 0.0
    %294 = vmatprep.mubr.f32.mxu0 0.0
    %295 = vmatmul.mubr.f32.gmra.mrb[0].mxu0 %v228
    %v296 = vpop.f32.mrb[0].mxu0
    %v297 = vadd.f32 %v208, %v296
    %v298 = vpop.f32.mrb[0].mxu0
    %299 = vdwg.mxu0
    %v300 = vlaneseq
    %v301 = vand.u32 %v300, 127
    %vm302 = vcmp.eq.s32.totalorder %v301, 9
    %v303 = vxor.u32 %v297, 2147483648
    %v304 = vmul.f32 %v303, 1.442695
    %v305 = vpow.pop %v304
    %v306 = vadd.f32 %v305, 1.0
    %v307 = vrcp.pop %v306
    %v308 = vmul.f32 1.0, %v307
    %v309 = vsel %vm302, %v308, %v297
    %vm310 = vcmask 76800
    %311 = vst.msk [vmem:[#allocation2] sm:$0xf] %vm310, %v309
    // Predicated region
    $region10: #{tpu_custom_call.1} parent=1 // pred_check
      _
    $region11: #{tpu_custom_call.1} parent=1 // pred_check_branch
      %313 = sbr.rel (0) target = $region13
    $region12: #{tpu_custom_call.1} parent=1 // pred_region
      %s315 = ssub.s32 64, 64
      %316 = vsyncadd [#allocation3], %s315
      %s318 = sshll.u32 [#allocation2], 4
      %s319 = int_to_ptr.vmem [resolvable:$true] %s318
      %321 = dma.vmem_to_hbm [thread:$0]  %s319, 64, %s2, [#allocation3]
    $region13: #{tpu_custom_call.1} parent=1 // pred_fallthru
      _
    // Predicated region
    $region14: #{tpu_custom_call.1} parent=1 // pred_check
      _
    $region15: #{tpu_custom_call.1} parent=1 // pred_check_branch
      %323 = sbr.rel (0) target = $region17
    $region16: #{tpu_custom_call.1} parent=1 // pred_region
      %324 = dma.done [#allocation3], 64
    $region17: #{tpu_custom_call.1} parent=1 // pred_fallthru
      _
    %325 = vsyncpa [#allocation3], 1

</llo_original>
